<compile_context>
chip_gen: v5e
topology: v5e:2x2
jax: 0.10.0
libtpu: 0.0.40
codegen_flags: <defaults>
</compile_context>

<pallas_src>
import jax
import jax.numpy as jnp
from jax.experimental import pallas as pl
from jax.experimental.pallas import tpu as pltpu


def _round_up(a: int, b: int) -> int:
    return (a + b - 1) // b * b


def _gamma(keep_prob: float, num_point: int) -> float:
    if num_point == 25:
        return (1.0 - keep_prob) / (1 + 1.92)
    elif num_point == 20:
        return (1.0 - keep_prob) / (1 + 1.9)
    return (1.0 - keep_prob) / (1 + 1.92)


def _sublane_multiple(itemsize: int) -> int:
    # f32 -> 8, bf16 -> 16, 8-bit -> 32 (packed sublane granularity).
    return max(8, 32 // max(itemsize, 1))


def _pick_tile_ct(ct: int, itemsize: int, lane: int,
                  target_buffer_bytes: int = 4 * 1024 * 1024) -> int:
    """Largest exact divisor of ct that is a legal sublane tile and keeps one
    VMEM buffer (lane-padded) at ~<= target_buffer_bytes.  Exact divisors avoid
    round-up padding traffic and edge-block masking."""
    sub = _sublane_multiple(itemsize)
    max_tile = max(sub, target_buffer_bytes // (lane * itemsize))
    if ct <= max_tile:
        return ct                       # single full-CT block (equals array dim)
    start = max_tile - (max_tile % sub)
    for cand in range(start, sub - 1, -sub):
        if ct % cand == 0:
            return cand
    # No aligned divisor (ct not a multiple of the sublane granularity):
    # fall back to one full-CT block, legal because it equals the array dim.
    return ct


# --------------------------- Pass 1: per-(n, v) sum(|x|) over C*T ------------

def _abs_rowsum_kernel(x_ref, o_ref):
    # Output block (1, 1, V) is resident across the reduction (last) grid axis:
    # init at k == 0, accumulate in f32 (important when x is bf16).
    @pl.when(pl.program_id(1) == 0)
    def _init():
        o_ref[...] = jnp.zeros_like(o_ref)

    xb = x_ref[...].astype(jnp.float32)                 # (1, TILE_CT, V)
    o_ref[...] += jnp.sum(jnp.abs(xb), axis=1, keepdims=True)


def _abs_joint_sums(x3, tile_ct, vmem_bytes):
    n, ct, v = x3.shape
    grid = (n, ct // tile_ct)
    bytes_accessed = x3.size * x3.dtype.itemsize + n * v * 4
    return pl.pallas_call(
        _abs_rowsum_kernel,
        out_shape=jax.ShapeDtypeStruct((n, 1, v), jnp.float32),
        grid=grid,
        in_specs=[pl.BlockSpec((1, tile_ct, v), lambda i, k: (i, k, 0))],
        out_specs=pl.BlockSpec((1, 1, v), lambda i, k: (i, 0, 0)),
        compiler_params=pltpu.CompilerParams(
            dimension_semantics=("parallel", "arbitrary"),
            vmem_limit_bytes=vmem_bytes),
        cost_estimate=pl.CostEstimate(
            flops=2 * x3.size, transcendentals=0, bytes_accessed=bytes_accessed),
    )(x3)


# --------------------------- Pass 2: streaming per-joint scale apply ---------

def _apply_scale_kernel(scale_ref, x_ref, o_ref):
    xb = x_ref[...].astype(jnp.float32)                 # (1, TILE_CT, V)
    s = scale_ref[...]                                  # (1, 1, V) f32
    o_ref[...] = (xb * s).astype(o_ref.dtype)           # cast only on the store


def _apply_joint_scale(x3, joint_scale, tile_ct, vmem_bytes):
    n, ct, v = x3.shape
    grid = (n, ct // tile_ct)
    bytes_accessed = 2 * x3.size * x3.dtype.itemsize + n * v * 4
    return pl.pallas_call(
        _apply_scale_kernel,
        out_shape=jax.ShapeDtypeStruct((n, ct, v), x3.dtype),
        grid=grid,
        in_specs=[pl.BlockSpec((1, 1, v), lambda i, j: (i, 0, 0)),
                  pl.BlockSpec((1, tile_ct, v), lambda i, j: (i, j, 0))],
        out_specs=pl.BlockSpec((1, tile_ct, v), lambda i, j: (i, j, 0)),
        compiler_params=pltpu.CompilerParams(
            dimension_semantics=("parallel", "parallel"),
            vmem_limit_bytes=vmem_bytes),
        cost_estimate=pl.CostEstimate(
            flops=2 * x3.size, transcendentals=0, bytes_accessed=bytes_accessed),
        # NOTE: input_output_aliases={1: 0} could write in place, but x also
        # feeds pass 1 and is usually a non-donated caller argument, so XLA
        # would insert a defensive copy; left to callers that can donate.
    )(joint_scale, x3)


# --------------------------- Public wrapper ----------------------------------

def dropblock_ske(x, A, keep_prob, *, num_point, training=True, key=None, seed=0):
    """Pallas implementation of DropBlock_Ske.forward(input, keep_prob, A).

    NOTE: pass a fresh `key` (or `seed`) every training step, otherwise the
    dropout pattern repeats across steps.
    """
    if (not training) or keep_prob == 1.0:
        return x

    n, c, t, v = x.shape
    assert v == num_point and A.shape == (v, v)
    if key is None:
        key = jax.random.PRNGKey(seed)

    ct = c * t
    x3 = x.reshape(n, ct, v)                 # free reshape — no transpose, no pad

    itemsize = x.dtype.itemsize
    lane = _round_up(v, 128)                 # VMEM lane padding of the V axis
    tile_ct = _pick_tile_ct(ct, itemsize, lane)

    # Scoped-VMEM sizing: double-buffered blocks (+ f32 compute temps) + slack.
    sub = _round_up(tile_ct, 8)
    blk_bytes = sub * lane * itemsize
    f32_tmp = sub * lane * 4
    vmem1 = max(2 * blk_bytes + 2 * f32_tmp + (2 << 20), 32 << 20)
    vmem2 = max(4 * blk_bytes + 2 * f32_tmp + (2 << 20), 32 << 20)

    # ---- Pass 1: per-(n, v) sum of |x| over C*T (tiled, pipelined) ----------
    sums = _abs_joint_sums(x3, tile_ct, vmem1)               # (n, 1, v) f32

    # ---- Tiny stats/mask stage on (N, V) in plain JAX -----------------------
    # (microscopic work: one (N,V)@(V,V) matmul + a few vregs of Bernoulli)
    input_abs = sums.reshape(n, v) / jnp.float32(ct)         # mean_{C,T}|x|
    total = jnp.sum(input_abs)
    input_abs = input_abs / jnp.maximum(total, jnp.float32(1e-12)) * jnp.float32(n * v)

    gamma = _gamma(keep_prob, num_point)
    p = jnp.minimum(input_abs * jnp.float32(gamma), jnp.float32(1.0))
    u = jax.random.uniform(key, (n, v), dtype=jnp.float32)
    m_seed = (u < p).astype(jnp.float32)                      # Bernoulli(p)
    m = jnp.dot(m_seed, A.astype(jnp.float32))                # propagate along skeleton
    # M[M > 0.001] = 1 ; M[M < 0.5] = 0  collapses exactly to (M > 0.001 ? 1 : 0).
    m = jnp.where(m > jnp.float32(0.001), jnp.float32(1.0), jnp.float32(0.0))
    mask = jnp.float32(1.0) - m                               # (n, v)
    mask_sum = jnp.sum(mask)
    scale = jnp.float32(n * v) / jnp.maximum(mask_sum, jnp.float32(1.0))
    joint_scale = (mask * scale).reshape(n, 1, v)             # f32

    # ---- Pass 2: streaming apply, per-joint scalar multiply, native layout --
    out3 = _apply_joint_scale(x3, joint_scale, tile_ct, vmem2)

    # TODO(synk): optional single-kernel fusion (read once / write once) when the
    # whole tensor fits VMEM (v5e/v6e 128 MiB) — gate on get_tpu_info().
    return out3.reshape(n, c, t, v)


# --------------------------- Pure-JAX reference (torch math) -----------------

def _dropblock_ske_reference(x, A, keep_prob, num_point, key):
    n, c, t, v = x.shape
    xf = x.astype(jnp.float32)
    input_abs = jnp.mean(jnp.mean(jnp.abs(xf), axis=2), axis=1)        # (n, v)
    input_abs = input_abs / jnp.sum(input_abs) * jnp.float32(n * v)
    gamma = _gamma(keep_prob, num_point)
    p = jnp.minimum(input_abs * jnp.float32(gamma), jnp.float32(1.0))
    u = jax.random.uniform(key, (n, v), dtype=jnp.float32)
    m_seed = (u < p).astype(jnp.float32)
    m = jnp.dot(m_seed, A.astype(jnp.float32))
    m = jnp.where(m > jnp.float32(0.001), jnp.float32(1.0), jnp.float32(0.0))
    mask = (jnp.float32(1.0) - m).reshape(n, 1, 1, v)
    return (xf * mask * jnp.float32(n * v) / jnp.sum(mask)).astype(x.dtype)


if __name__ == "__main__":
    root = jax.random.PRNGKey(0)
    kx, ka, kdrop = jax.random.split(root, 3)

    # Small shapes consistent with the module: num_point = 25 joints.
    n, c, t, v = 2, 4, 16, 25
    x = jax.random.normal(kx, (n, c, t, v), dtype=jnp.float32)

    # Deterministic synthetic skeleton adjacency (binary, with self-loops).
    A = (jax.random.uniform(ka, (v, v)) < 0.15).astype(jnp.float32)
    A = jnp.clip(A + A.T + jnp.eye(v, dtype=jnp.float32), 0.0, 1.0)

    out = dropblock_ske(x, A, keep_prob=0.9, num_point=v, training=True, key=kdrop)
    out = jax.block_until_ready(out)
    assert out.shape == x.shape and out.dtype == x.dtype

    # Compare against a plain-JAX transcription of the torch module using the
    # same uniform draws (same key) -> deterministic check.
    ref = _dropblock_ske_reference(x, A, keep_prob=0.9, num_point=v, key=kdrop)
    assert jnp.allclose(out, ref, rtol=2e-5, atol=2e-5), "mismatch vs reference"

    # Eval path returns the input untouched, like the torch module.
    out_eval = dropblock_ske(x, A, keep_prob=0.9, num_point=v, training=False)
    assert out_eval is x

    print("KERNEL_OK")
</pallas_src>

<mosaic_0001>
module attributes {stable_mosaic.version = 11 : i64} {
  func.func @_abs_rowsum_kernel(%arg0: i32, %arg1: i32, %arg2: memref<1x64x25xf32, #tpu.memory_space<vmem>>, %arg3: memref<1x1x25xf32, #tpu.memory_space<vmem>>) attributes {dimension_semantics = [#tpu.dimension_semantics<parallel>, #tpu.dimension_semantics<arbitrary>], iteration_bounds = array<i64: 2, 1>, scalar_prefetch = 0 : i64, scratch_operands = 0 : i64, tpu.core_type = #tpu.core_type<tc>, window_params = [{transform_indices = @transform_0, window_bounds = array<i64: 1, 64, 25>}, {transform_indices = @transform_1, window_bounds = array<i64: 1, 1, 25>}]} {
    %c0_i32 = arith.constant 0 : i32
    %0 = arith.cmpi eq, %arg1, %c0_i32 : i32
    %1 = arith.extui %0 : i1 to i32
    %c0_i32_0 = arith.constant 0 : i32
    %2 = arith.cmpi ne, %1, %c0_i32_0 : i32
    scf.if %2 {
      %cst_9 = arith.constant 0.000000e+00 : f32
      %10 = vector.broadcast %cst_9 : f32 to vector<1x1x25xf32>
      %c0_10 = arith.constant 0 : index
      %c0_11 = arith.constant 0 : index
      %c0_12 = arith.constant 0 : index
      %11 = vector.load %arg3[%c0_10, %c0_11, %c0_12] : memref<1x1x25xf32, #tpu.memory_space<vmem>>, vector<1x1x25xf32>
      tpu.vector_store %arg3[%c0_10, %c0_11, %c0_12], %10 {strides = array<i32>} : memref<1x1x25xf32, #tpu.memory_space<vmem>>, vector<1x1x25xf32>,
    } else {
    }
    %c0 = arith.constant 0 : index
    %c0_1 = arith.constant 0 : index
    %c0_2 = arith.constant 0 : index
    %3 = vector.load %arg2[%c0, %c0_1, %c0_2] : memref<1x64x25xf32, #tpu.memory_space<vmem>>, vector<1x64x25xf32>
    %c0_3 = arith.constant 0 : index
    %c0_4 = arith.constant 0 : index
    %c0_5 = arith.constant 0 : index
    %4 = vector.load %arg3[%c0_3, %c0_4, %c0_5] : memref<1x1x25xf32, #tpu.memory_space<vmem>>, vector<1x1x25xf32>
    %5 = math.absf %3 : vector<1x64x25xf32>
    %cst = arith.constant dense<0.000000e+00> : vector<1x25xf32>
    %6 = vector.multi_reduction <add>, %5, %cst [1] : vector<1x64x25xf32> to vector<1x25xf32>
    %7 = vector.shape_cast %6 : vector<1x25xf32> to vector<1x1x25xf32>
    %8 = arith.addf %4, %7 : vector<1x1x25xf32>
    %c0_6 = arith.constant 0 : index
    %c0_7 = arith.constant 0 : index
    %c0_8 = arith.constant 0 : index
    %9 = vector.load %arg3[%c0_6, %c0_7, %c0_8] : memref<1x1x25xf32, #tpu.memory_space<vmem>>, vector<1x1x25xf32>
    tpu.vector_store %arg3[%c0_6, %c0_7, %c0_8], %8 {strides = array<i32>} : memref<1x1x25xf32, #tpu.memory_space<vmem>>, vector<1x1x25xf32>,
    return
  }
  func.func @transform_0(%arg0: i32, %arg1: i32) -> (i32, i32, i32) {
    %c0_i32 = arith.constant 0 : i32
    %c0_i32_0 = arith.constant 0 : i32
    return %arg0, %arg1, %c0_i32 : i32, i32, i32
  }
  func.func @transform_1(%arg0: i32, %arg1: i32) -> (i32, i32, i32) {
    %c0_i32 = arith.constant 0 : i32
    %c0_i32_0 = arith.constant 0 : i32
    %c0_i32_1 = arith.constant 0 : i32
    return %arg0, %c0_i32, %c0_i32_0 : i32, i32, i32
  }
}

</mosaic_0001>

<llo_original>
// kernel: tpu_custom_call.1
$region0: #{tpu_custom_call.1}
  #allocation0 [shape = 'u32[]', space=smem, size = 0x4, offset = 0x4, fixed_abs, tag = 'smem constant byte address 0x4 - core index']
  #allocation1 [shape = 'u32[72,128]{1,0:T(1,128)}', space=vmem, size = 0x9000, scoped, tag = 'internal scratch']
  %s0 = inlined_call_operand.vmem [shape: f32[2,64,25], index: 0, kind: input, shape index: {}]
  %s1 = inlined_call_operand.hbm [shape: f32[2,1,25], index: 1, kind: output, shape index: {}]
  %s2 = sld [smem:[#allocation0]]
  $region41: #{tpu_custom_call.1} parent=0
    _
  %s4 = ssub.s32 1, %s2
  %s5 = scalar_select 0, %s4, %s2
  $region1: #{tpu_custom_call.1} parent=0
    #allocation2 [shape = 'u8[1024]{0}', space=vmem, size = 0x400, scoped, tag = 'output window, operand 0']
    #allocation3 [shape = 's32[2]{0}', space=sflag, size = 0x8, scoped, tag = 'scoped memory for tpu_custom_call.1']
    %6 = vsyncpa [#allocation3], 0
    %s7 = scalar_lea.sflag [#allocation3], 1
    %8 = vsyncpa %s7, 0
    loop: start=0, step=1, limit=4
    $region2: #{tpu_custom_call.1} parent=1 // loop_pre_header
      _
    $region3: #{tpu_custom_call.1} parent=1 // loop_header
      %s10 = sphi 0, %s14
      %p11 = scmp.ge.s32.totalorder %s10, 4
      %s17 = sphi 0, %s29
      %s18 = sphi 0, %s25
      %s19 = sphi 0, %s17
      %s20 = sphi 0, %s18
      %s21 = sphi 0, %s19
      %s22 = sphi 0, %s20
      %s34 = sphi 0, %s36
      %s37 = sphi 0, %s34
      %s38 = sphi 0, %s37
      %s54 = sphi 0, %s38
      %s60 = sphi 0, %s62
      %s63 = sphi 0, %s60
      %s64 = sphi 0, %s63
      %s80 = sphi 0, %s64
    $region4: #{tpu_custom_call.1} parent=1 // loop_header_branch
      %13 = sbr.rel (%p11) target = $region8
    $region5: #{tpu_custom_call.1} parent=1 // loop_body
      %s15 = ssub.s32 %s10, 1
      %s16 = ssub.s32 %s10, 2
      %s23 = sadd.s32 1, %s18
      %p24 = scmp.ge.s32.totalorder %s23, 1
      %s25 = scalar_select %p24, 0, %s23
      %s26 = sadd.s32 1, %s17
      %s27 = scalar_select %p24, %s26, %s17
      %p28 = scmp.ge.s32.totalorder %s27, 2
      %s29 = scalar_select %p28, 0, %s27
      %s30 = ssub.s32 %s17, %s29
      %s31 = ssub.s32 %s18, %s25
      %s32 = sor.u32 %s30, %s31
      %p33 = scmp.eq.s32.totalorder %s32, 0
      %s35 = sadd.s32 %s34, 1
      %s36 = scalar_select %p33, %s34, %s35
      %p39 = pneg %p33
      %p40 = scmp.eq.s32.totalorder %s10, 1
      %p41 = por %p39, %p40
      %p42 = scmp.ne.s32.totalorder %s34, %s37
      %p43 = scmp.eq.s32.totalorder %s10, 0
      %p44 = por %p42, %p43
      %p45 = scmp.ne.s32.totalorder %s34, %s37
      %p46 = scmp.eq.s32.totalorder %s15, 1
      %p47 = por %p45, %p46
      %p48 = scmp.ne.s32.totalorder %s37, %s38
      %p49 = scmp.eq.s32.totalorder %s15, 0
      %p50 = por %p48, %p49
      %p51 = scmp.ne.s32.totalorder %s37, %s38
      %p52 = scmp.eq.s32.totalorder %s16, 1
      %p53 = por %p51, %p52
      %p55 = scmp.ne.s32.totalorder %s38, %s54
      %p56 = scmp.eq.s32.totalorder %s16, 0
      %p57 = por %p55, %p56
      %s58 = ssub.s32 %s17, %s29
      %p59 = scmp.eq.s32.totalorder %s58, 0
      %s61 = sadd.s32 %s60, 1
      %s62 = scalar_select %p59, %s60, %s61
      %p65 = pneg %p59
      %p66 = scmp.eq.s32.totalorder %s10, 1
      %p67 = por %p65, %p66
      %p68 = scmp.ne.s32.totalorder %s60, %s63
      %p69 = scmp.eq.s32.totalorder %s10, 0
      %p70 = por %p68, %p69
      %p71 = scmp.ne.s32.totalorder %s60, %s63
      %p72 = scmp.eq.s32.totalorder %s15, 1
      %p73 = por %p71, %p72
      %p74 = scmp.ne.s32.totalorder %s63, %s64
      %p75 = scmp.eq.s32.totalorder %s15, 0
      %p76 = por %p74, %p75
      %p77 = scmp.ne.s32.totalorder %s63, %s64
      %p78 = scmp.eq.s32.totalorder %s16, 1
      %p79 = por %p77, %p78
      %p81 = scmp.ne.s32.totalorder %s64, %s80
      %p82 = scmp.eq.s32.totalorder %s16, 0
      %p83 = por %p81, %p82
      %p84 = scmp.le.s32.totalorder 1, %s10
      %p85 = scmp.lt.s32.totalorder %s10, 3
      %p86 = pnand %p84, %p85
      %p87 = pneg %p86
      // Predicated region
      $region9: #{tpu_custom_call.1} parent=5 // pred_check
        _
      $region10: #{tpu_custom_call.1} parent=5 // pred_check_branch
        %89 = sbr.rel (%p86) target = $region12
      $region11: #{tpu_custom_call.1} parent=5 // pred_region
        %s90 = ssub.s32 %s10, 1
      $region12: #{tpu_custom_call.1} parent=5 // pred_fallthru
        _
      %p91 = scmp.lt.s32.totalorder %s10, 2
      // Predicated region
      $region13: #{tpu_custom_call.1} parent=5 // pred_check
        %p92 = pneg %p91
      $region14: #{tpu_custom_call.1} parent=5 // pred_check_branch
        %94 = sbr.rel (%p92) target = $region16
      $region15: #{tpu_custom_call.1} parent=5 // pred_region
        // Predicated region
        $region17: #{tpu_custom_call.1} parent=15 // pred_check
          %p95 = pneg %p44
        $region18: #{tpu_custom_call.1} parent=15 // pred_check_branch
          %97 = sbr.rel (%p95) target = $region20
        $region19: #{tpu_custom_call.1} parent=15 // pred_region
          %s98 = smul.u32 8, %s18
          %p99 = scmp.lt.s32.totalorder %s17, 1
          %s100 = scalar_select %p99, %s17, 1
          %p101 = scmp.lt.s32.totalorder %s98, 7
          %s102 = scalar_select %p101, %s98, 7
          %s103 = smul.addr %s100, 8
          %s104 = sadd.s32 %s102, %s103
          %s105 = smul.addr %s104, 8
          %s106 = scalar_lea.vmem %s0, %s105
          %s107 = smul.u32 8, %s18
        $region20: #{tpu_custom_call.1} parent=15 // pred_fallthru
          _
      $region16: #{tpu_custom_call.1} parent=5 // pred_fallthru
        _
      %p108 = scmp.le.s32.totalorder 1, %s10
      %p109 = scmp.lt.s32.totalorder %s10, 3
      %p110 = pnand %p108, %p109
      %p111 = pneg %p110
      // Predicated region
      $region21: #{tpu_custom_call.1} parent=5 // pred_check
        _
      $region22: #{tpu_custom_call.1} parent=5 // pred_check_branch
        %113 = sbr.rel (%p110) target = $region24
      $region23: #{tpu_custom_call.1} parent=5 // pred_region
        %s114 = ssub.s32 %s10, 1
        %s115 = smul.u32 8, %s20
        %p116 = scmp.lt.s32.totalorder %s19, 1
        %s117 = scalar_select %p116, %s19, 1
        %p118 = scmp.lt.s32.totalorder %s115, 7
        %s119 = scalar_select %p118, %s115, 7
        %s120 = smul.addr %s117, 8
        %s121 = sadd.s32 %s119, %s120
        %s122 = smul.addr %s121, 8
        %s123 = scalar_lea.vmem %s0, %s122
        %p124 = pneg %p50
        %p125 = pneg %p47
        %p126 = pneg %p76
        %p127 = pneg %p73
        %s128 = sand.u32 %s63, 1
        %s129 = scalar_lea.sflag [#allocation3], %s128
        %s130 = sand.u32 %s63, 1
        %s131 = scalar_lea.vmem [#allocation2], %s130
        %s132 = smul.u32 8, %s20
        %p133 = scmp.lt.s32.totalorder %s19, 1
        %s134 = scalar_select %p133, %s19, 1
        %p135 = scmp.lt.s32.totalorder %s132, 7
        %s136 = scalar_select %p135, %s132, 7
        %s137 = smul.addr %s134, 8
        %s138 = sadd.s32 %s136, %s137
        %s139 = smul.addr %s138, 8
        %s140 = scalar_lea.vmem %s0, %s139
        %s141 = smul.u32 8, %s20
        %p142 = scmp.eq.s32.totalorder %s20, 0
        // Predicated region
        $region25: #{tpu_custom_call.1} parent=23 // pred_check
          %p143 = pneg %p142
        $region26: #{tpu_custom_call.1} parent=23 // pred_check_branch
          %145 = sbr.rel (%p143) target = $region28
        $region27: #{tpu_custom_call.1} parent=23 // pred_region
          %vm146 = vcmask 196608
          %147 = vst.msk [vmem:[%s131] sm:$0x1] %vm146, 0.0
        $region28: #{tpu_custom_call.1} parent=23 // pred_fallthru
          _
        %v148 = vld [vmem:[%s140] sm:$0xff]
        %v149 = vld [vmem:[%s140 + $0x8] sm:$0xff]
        %v150 = vld [vmem:[%s140 + $0x10] sm:$0xff]
        %v151 = vld [vmem:[%s140 + $0x18] sm:$0xff]
        %v152 = vld [vmem:[%s140 + $0x20] sm:$0xff]
        %v153 = vld [vmem:[%s140 + $0x28] sm:$0xff]
        %v154 = vld [vmem:[%s140 + $0x30] sm:$0xff]
        %v155 = vld [vmem:[%s140 + $0x38] sm:$0xff]
        %v156 = vld [vmem:[%s131] sm:$0x1]
        %v157 = vand.u32 2147483647, %v148
        %v158 = vand.u32 2147483647, %v149
        %v159 = vand.u32 2147483647, %v150
        %v160 = vand.u32 2147483647, %v151
        %v161 = vand.u32 2147483647, %v152
        %v162 = vand.u32 2147483647, %v153
        %v163 = vand.u32 2147483647, %v154
        %v164 = vand.u32 2147483647, %v155
        %vm165 = vcmask 203776
        %v166 = vsel %vm165, %v157, 0.0
        %v167 = vsel %vm165, %v158, 0.0
        %v168 = vadd.f32 %v166, %v167
        %v169 = vsel %vm165, %v159, 0.0
        %v170 = vadd.f32 %v168, %v169
        %v171 = vsel %vm165, %v160, 0.0
        %v172 = vadd.f32 %v170, %v171
        %v173 = vsel %vm165, %v161, 0.0
        %v174 = vadd.f32 %v172, %v173
        %v175 = vsel %vm165, %v162, 0.0
        %v176 = vadd.f32 %v174, %v175
        %v177 = vsel %vm165, %v163, 0.0
        %v178 = vadd.f32 %v176, %v177
        %v179 = vsel %vm165, %v164, 0.0
        %v180 = vadd.f32 %v178, %v179
        %v181 = vrot.slane %v180, 4
        %v182 = vadd.f32 %v180, %v181
        %v183 = vrot.slane %v182, 2
        %v184 = vadd.f32 %v182, %v183
        %v185 = vrot.slane %v184, 1
        %v186 = vadd.f32 %v184, %v185
        %v187 = vadd.f32 %v156, %v186
        %vm188 = vcmask 196608
        %189 = vst.msk [vmem:[%s131] sm:$0x1] %vm188, %v187
        %s190 = sand.u32 %s63, 1
        %s191 = scalar_lea.sflag [#allocation3], %s190
        %s192 = sand.u32 %s63, 1
        %s193 = scalar_lea.vmem [#allocation2], %s192
        // Predicated region
        $region29: #{tpu_custom_call.1} parent=23 // pred_check
          %p194 = pneg %p73
        $region30: #{tpu_custom_call.1} parent=23 // pred_check_branch
          %196 = sbr.rel (%p194) target = $region32
        $region31: #{tpu_custom_call.1} parent=23 // pred_region
          %198 = vsyncadd %s191, 0
          %s199 = scalar_lea.hbm %s1, %s19
          %s201 = sshll.u32 %s193, 4
          %s202 = int_to_ptr.vmem [resolvable:$true] %s201
          %s203 = sshll.u32 %s199, 4
          %s204 = int_to_ptr.hbm [resolvable:$true] %s203
          %206 = dma.vmem_to_hbm [thread:$0]  %s202, 16, %s204, %s191
        $region32: #{tpu_custom_call.1} parent=23 // pred_fallthru
          _
      $region24: #{tpu_custom_call.1} parent=5 // pred_fallthru
        _
      %p207 = scmp.le.s32.totalorder 2, %s10
      // Predicated region
      $region33: #{tpu_custom_call.1} parent=5 // pred_check
        %p208 = pneg %p207
      $region34: #{tpu_custom_call.1} parent=5 // pred_check_branch
        %210 = sbr.rel (%p208) target = $region36
      $region35: #{tpu_custom_call.1} parent=5 // pred_region
        %s211 = ssub.s32 %s10, 2
        // Predicated region
        $region37: #{tpu_custom_call.1} parent=35 // pred_check
          %p212 = pneg %p79
        $region38: #{tpu_custom_call.1} parent=35 // pred_check_branch
          %214 = sbr.rel (%p212) target = $region40
        $region39: #{tpu_custom_call.1} parent=35 // pred_region
          %s215 = sand.u32 %s64, 1
          %s216 = scalar_lea.sflag [#allocation3], %s215
          %s217 = sand.u32 %s64, 1
          %s218 = scalar_lea.vmem [#allocation2], %s217
          %220 = dma.done %s216, 16
        $region40: #{tpu_custom_call.1} parent=35 // pred_fallthru
          _
      $region36: #{tpu_custom_call.1} parent=5 // pred_fallthru
        _
    $region6: #{tpu_custom_call.1} parent=1 // loop_footer
      %s14 = sadd.s32 1, %s10
    $region7: #{tpu_custom_call.1} parent=1 // loop_footer_branch
      %9 = sbr.rel target = $region3
    $region8: #{tpu_custom_call.1} parent=1 // loop_exit
      _
    %221 = vsyncpa [#allocation3], 1
    %s222 = scalar_lea.sflag [#allocation3], 1
    %223 = vsyncpa %s222, 1

</llo_original>
